<compile_context>
chip_gen: v7x
topology: tpu7x:2x2x1
jax: 0.10.0
libtpu: 0.0.40
codegen_flags: <defaults>
</compile_context>

<pallas_src>
import jax
import jax.numpy as jnp
from jax.experimental import pallas as pl
from jax.experimental.pallas import tpu as pltpu

K_IN = 1 * 28 * 28          # 784 (flattened MNIST-shaped input)
H1 = 128
H2 = 64
N_OUT = 5


def _round_up(x, m):
    return ((x + m - 1) // m) * m


def _fiveway_kernel(x_ref, w1_ref, b1_ref, w2_ref, b2_ref, w3_ref, b3_ref, out_ref):
    # x_ref: (TB, 784) f32 streamed from HBM.  Cast operands to bf16 for the MXU
    # (cheap VPU filler, hidden under the x DMA); accumulate in f32; bias+ReLU in f32.
    x = x_ref[...].astype(jnp.bfloat16)

    # fc1 + relu: (TB,784) @ (784,128) + (1,128)
    h = jnp.dot(x, w1_ref[...].astype(jnp.bfloat16),
                preferred_element_type=jnp.float32) + b1_ref[...]
    h = jnp.maximum(h, 0.0).astype(jnp.bfloat16)

    # fc2 + relu: (TB,128) @ (128,64) + (1,64)
    h = jnp.dot(h, w2_ref[...].astype(jnp.bfloat16),
                preferred_element_type=jnp.float32) + b2_ref[...]
    h = jnp.maximum(h, 0.0).astype(jnp.bfloat16)

    # fc3 logits: (TB,64) @ (64,5) + (1,5) -> narrow (TB,5) store
    out_ref[...] = (
        jnp.dot(h, w3_ref[...].astype(jnp.bfloat16),
                preferred_element_type=jnp.float32) + b3_ref[...]
    ).astype(out_ref.dtype)


def fiveway_net(x, params, *, tb=2048, vmem_limit_bytes=None):
    """x: (B, 1, 28, 28) float32 (NCHW). Returns (B, 5) float32 logits."""
    w1, b1, w2, b2, w3, b3 = params
    B = x.shape[0]
    x_flat = x.reshape(B, K_IN)  # free view, same ordering as torch.flatten(x, 1)

    # --- batch tile: multiple of 8 sublanes, no input padding needed ---
    tb_eff = min(tb, _round_up(B, 8))
    # v7x megacore: make sure the grid has >= 2 steps when B is big enough so both
    # TensorCores get work (no-op cost on v5e/v6e).
    if B >= 16 and pl.cdiv(B, tb_eff) < 2:
        tb_eff = _round_up(pl.cdiv(B, 2), 8)
    grid = (pl.cdiv(B, tb_eff),)  # ragged last block handled by Pallas masking

    # --- advisory cost estimate for the XLA scheduler ---
    flops = 2 * B * (K_IN * H1 + H1 * H2 + H2 * N_OUT)
    bytes_accessed = (
        B * (K_IN + N_OUT) * 4                              # x read + logits write (f32)
        + (K_IN * H1 + H1 * H2 + H2 * N_OUT) * 4            # weights (f32)
        + (H1 + H2 + N_OUT) * 4                             # biases (f32)
    )
    cost = pl.CostEstimate(flops=flops, transcendentals=0,
                           bytes_accessed=bytes_accessed)

    out = pl.pallas_call(
        _fiveway_kernel,
        out_shape=jax.ShapeDtypeStruct((B, N_OUT), jnp.float32),
        grid=grid,
        in_specs=[
            pl.BlockSpec((tb_eff, K_IN), lambda i: (i, 0)),  # x tile (pipelined stream)
            pl.BlockSpec((K_IN, H1), lambda i: (0, 0)),      # w1 (resident)
            pl.BlockSpec((1, H1), lambda i: (0, 0)),         # b1
            pl.BlockSpec((H1, H2), lambda i: (0, 0)),        # w2
            pl.BlockSpec((1, H2), lambda i: (0, 0)),         # b2
            pl.BlockSpec((H2, N_OUT), lambda i: (0, 0)),     # w3 (narrow, full last dim)
            pl.BlockSpec((1, N_OUT), lambda i: (0, 0)),      # b3
        ],
        out_specs=pl.BlockSpec((tb_eff, N_OUT), lambda i: (i, 0)),
        compiler_params=pltpu.CompilerParams(
            dimension_semantics=("parallel",),
            vmem_limit_bytes=vmem_limit_bytes,
        ),
        cost_estimate=cost,
    )(x_flat, w1, b1, w2, b2, w3, b3)

    return out


def init_params(key):
    """Deterministic init matching PyTorch nn.Linear shapes.

    PyTorch stores weight as (out, in); we store the transpose (in, out) so the
    kernel computes x @ W.  Values use uniform(-1/sqrt(fan_in), 1/sqrt(fan_in))
    like torch's default init (values themselves are synthetic / deterministic).
    """
    dims = [(K_IN, H1), (H1, H2), (H2, N_OUT)]
    params = []
    for i, (fan_in, fan_out) in enumerate(dims):
        kw, kb = jax.random.split(jax.random.fold_in(key, i))
        bound = 1.0 / jnp.sqrt(float(fan_in))
        w = jax.random.uniform(kw, (fan_in, fan_out), jnp.float32, -bound, bound)
        b = jax.random.uniform(kb, (1, fan_out), jnp.float32, -bound, bound)
        params += [w, b]
    return tuple(params)


def _reference(x, params):
    """Pure-f32 reference matching the original PyTorch module semantics."""
    w1, b1, w2, b2, w3, b3 = params
    h = x.reshape(x.shape[0], -1)
    h = jax.nn.relu(h @ w1 + b1)
    h = jax.nn.relu(h @ w2 + b2)
    return h @ w3 + b3


if __name__ == "__main__":
    key = jax.random.PRNGKey(0)
    params = init_params(key)

    # small batch of MNIST-shaped inputs: (B, 1, 28, 28) NCHW
    x = jax.random.normal(jax.random.fold_in(key, 100), (2, 1, 28, 28), jnp.float32)

    out = fiveway_net(x, params)
    out = jax.block_until_ready(out)

    ref = _reference(x, params)
    assert out.shape == (2, N_OUT), out.shape
    # bf16 MXU operands with f32 accumulation -> compare to the f32 reference with
    # a tolerance that comfortably covers bf16 operand rounding.
    assert jnp.allclose(out, ref, atol=2e-2, rtol=2e-2), "mismatch vs reference"

    print("KERNEL_OK")
</pallas_src>

<mosaic_0001>
module attributes {stable_mosaic.version = 11 : i64} {
  func.func @_fiveway_kernel(%arg0: i32, %arg1: memref<8x784xf32, #tpu.memory_space<vmem>>, %arg2: memref<784x128xf32, #tpu.memory_space<vmem>>, %arg3: memref<1x128xf32, #tpu.memory_space<vmem>>, %arg4: memref<128x64xf32, #tpu.memory_space<vmem>>, %arg5: memref<1x64xf32, #tpu.memory_space<vmem>>, %arg6: memref<64x5xf32, #tpu.memory_space<vmem>>, %arg7: memref<1x5xf32, #tpu.memory_space<vmem>>, %arg8: memref<8x5xf32, #tpu.memory_space<vmem>>) attributes {dimension_semantics = [#tpu.dimension_semantics<parallel>], iteration_bounds = array<i64: 1>, scalar_prefetch = 0 : i64, scratch_operands = 0 : i64, tpu.core_type = #tpu.core_type<tc>, window_params = [{transform_indices = @transform_0, window_bounds = array<i64: 8, 784>}, {pipeline_mode = #tpu.pipeline_mode<synchronous>, transform_indices = @transform_1, window_bounds = array<i64: 784, 128>}, {pipeline_mode = #tpu.pipeline_mode<synchronous>, transform_indices = @transform_2, window_bounds = array<i64: 1, 128>}, {pipeline_mode = #tpu.pipeline_mode<synchronous>, transform_indices = @transform_3, window_bounds = array<i64: 128, 64>}, {pipeline_mode = #tpu.pipeline_mode<synchronous>, transform_indices = @transform_4, window_bounds = array<i64: 1, 64>}, {pipeline_mode = #tpu.pipeline_mode<synchronous>, transform_indices = @transform_5, window_bounds = array<i64: 64, 5>}, {pipeline_mode = #tpu.pipeline_mode<synchronous>, transform_indices = @transform_6, window_bounds = array<i64: 1, 5>}, {transform_indices = @transform_7, window_bounds = array<i64: 8, 5>}]} {
    %c0 = arith.constant 0 : index
    %c0_0 = arith.constant 0 : index
    %0 = vector.load %arg1[%c0, %c0_0] : memref<8x784xf32, #tpu.memory_space<vmem>>, vector<8x784xf32>
    %1 = arith.truncf %0 : vector<8x784xf32> to vector<8x784xbf16>
    %c0_1 = arith.constant 0 : index
    %c0_2 = arith.constant 0 : index
    %2 = vector.load %arg2[%c0_1, %c0_2] : memref<784x128xf32, #tpu.memory_space<vmem>>, vector<784x128xf32>
    %3 = arith.truncf %2 : vector<784x128xf32> to vector<784x128xbf16>
    %cst = arith.constant dense<0.000000e+00> : vector<8x128xf32>
    %4 = tpu.matmul %1, %3, %cst {dimension_numbers = #tpu.dot_dimension_numbers<[1], [0], [0], [1], [0, 0, 1, 1], [], []>} : vector<8x784xbf16>, vector<784x128xbf16>, vector<8x128xf32> -> vector<8x128xf32>
    %c0_3 = arith.constant 0 : index
    %c0_4 = arith.constant 0 : index
    %5 = vector.load %arg3[%c0_3, %c0_4] : memref<1x128xf32, #tpu.memory_space<vmem>>, vector<1x128xf32>
    %6 = vector.broadcast %5 : vector<1x128xf32> to vector<8x128xf32>
    %7 = arith.addf %4, %6 : vector<8x128xf32>
    %cst_5 = arith.constant 0.000000e+00 : f32
    %8 = vector.broadcast %cst_5 : f32 to vector<8x128xf32>
    %9 = arith.maximumf %7, %8 : vector<8x128xf32>
    %10 = arith.truncf %9 : vector<8x128xf32> to vector<8x128xbf16>
    %c0_6 = arith.constant 0 : index
    %c0_7 = arith.constant 0 : index
    %11 = vector.load %arg4[%c0_6, %c0_7] : memref<128x64xf32, #tpu.memory_space<vmem>>, vector<128x64xf32>
    %12 = arith.truncf %11 : vector<128x64xf32> to vector<128x64xbf16>
    %cst_8 = arith.constant dense<0.000000e+00> : vector<8x64xf32>
    %13 = tpu.matmul %10, %12, %cst_8 {dimension_numbers = #tpu.dot_dimension_numbers<[1], [0], [0], [1], [0, 0, 1, 1], [], []>} : vector<8x128xbf16>, vector<128x64xbf16>, vector<8x64xf32> -> vector<8x64xf32>
    %c0_9 = arith.constant 0 : index
    %c0_10 = arith.constant 0 : index
    %14 = vector.load %arg5[%c0_9, %c0_10] : memref<1x64xf32, #tpu.memory_space<vmem>>, vector<1x64xf32>
    %15 = vector.broadcast %14 : vector<1x64xf32> to vector<8x64xf32>
    %16 = arith.addf %13, %15 : vector<8x64xf32>
    %cst_11 = arith.constant 0.000000e+00 : f32
    %17 = vector.broadcast %cst_11 : f32 to vector<8x64xf32>
    %18 = arith.maximumf %16, %17 : vector<8x64xf32>
    %19 = arith.truncf %18 : vector<8x64xf32> to vector<8x64xbf16>
    %c0_12 = arith.constant 0 : index
    %c0_13 = arith.constant 0 : index
    %20 = vector.load %arg6[%c0_12, %c0_13] : memref<64x5xf32, #tpu.memory_space<vmem>>, vector<64x5xf32>
    %21 = arith.truncf %20 : vector<64x5xf32> to vector<64x5xbf16>
    %cst_14 = arith.constant dense<0.000000e+00> : vector<8x5xf32>
    %22 = tpu.matmul %19, %21, %cst_14 {dimension_numbers = #tpu.dot_dimension_numbers<[1], [0], [0], [1], [0, 0, 1, 1], [], []>} : vector<8x64xbf16>, vector<64x5xbf16>, vector<8x5xf32> -> vector<8x5xf32>
    %c0_15 = arith.constant 0 : index
    %c0_16 = arith.constant 0 : index
    %23 = vector.load %arg7[%c0_15, %c0_16] : memref<1x5xf32, #tpu.memory_space<vmem>>, vector<1x5xf32>
    %24 = vector.broadcast %23 : vector<1x5xf32> to vector<8x5xf32>
    %25 = arith.addf %22, %24 : vector<8x5xf32>
    %c0_17 = arith.constant 0 : index
    %c0_18 = arith.constant 0 : index
    %26 = vector.load %arg8[%c0_17, %c0_18] : memref<8x5xf32, #tpu.memory_space<vmem>>, vector<8x5xf32>
    tpu.vector_store %arg8[%c0_17, %c0_18], %25 {strides = array<i32>} : memref<8x5xf32, #tpu.memory_space<vmem>>, vector<8x5xf32>,
    return
  }
  func.func @transform_0(%arg0: i32) -> (i32, i32) {
    %c0_i32 = arith.constant 0 : i32
    %c0_i32_0 = arith.constant 0 : i32
    return %arg0, %c0_i32 : i32, i32
  }
  func.func @transform_1(%arg0: i32) -> (i32, i32) {
    %c0_i32 = arith.constant 0 : i32
    %c0_i32_0 = arith.constant 0 : i32
    %c0_i32_1 = arith.constant 0 : i32
    return %c0_i32, %c0_i32_0 : i32, i32
  }
  func.func @transform_2(%arg0: i32) -> (i32, i32) {
    %c0_i32 = arith.constant 0 : i32
    %c0_i32_0 = arith.constant 0 : i32
    %c0_i32_1 = arith.constant 0 : i32
    return %c0_i32, %c0_i32_0 : i32, i32
  }
  func.func @transform_3(%arg0: i32) -> (i32, i32) {
    %c0_i32 = arith.constant 0 : i32
    %c0_i32_0 = arith.constant 0 : i32
    %c0_i32_1 = arith.constant 0 : i32
    return %c0_i32, %c0_i32_0 : i32, i32
  }
  func.func @transform_4(%arg0: i32) -> (i32, i32) {
    %c0_i32 = arith.constant 0 : i32
    %c0_i32_0 = arith.constant 0 : i32
    %c0_i32_1 = arith.constant 0 : i32
    return %c0_i32, %c0_i32_0 : i32, i32
  }
  func.func @transform_5(%arg0: i32) -> (i32, i32) {
    %c0_i32 = arith.constant 0 : i32
    %c0_i32_0 = arith.constant 0 : i32
    %c0_i32_1 = arith.constant 0 : i32
    return %c0_i32, %c0_i32_0 : i32, i32
  }
  func.func @transform_6(%arg0: i32) -> (i32, i32) {
    %c0_i32 = arith.constant 0 : i32
    %c0_i32_0 = arith.constant 0 : i32
    %c0_i32_1 = arith.constant 0 : i32
    return %c0_i32, %c0_i32_0 : i32, i32
  }
  func.func @transform_7(%arg0: i32) -> (i32, i32) {
    %c0_i32 = arith.constant 0 : i32
    %c0_i32_0 = arith.constant 0 : i32
    return %arg0, %c0_i32 : i32, i32
  }
}

</mosaic_0001>

<llo_original>
// kernel: tpu_custom_call.1
$region0: #{tpu_custom_call.1}
  #allocation0 [shape = 'u32[]', space=smem, size = 0x4, offset = 0x4, fixed_abs, tag = 'smem constant byte address 0x4 - core index']
  #allocation1 [shape = 'u32[144,128]{1,0:T(1,128)}', space=vmem, size = 0x12000, scoped, tag = 'internal scratch']
  %s0 = inlined_call_operand.vmem [shape: f32[2,784], index: 0, kind: input, shape index: {}]
  %s1 = inlined_call_operand.hbm [shape: f32[784,128], index: 1, kind: input, shape index: {}]
  %s2 = inlined_call_operand.vmem [shape: f32[1,128], index: 2, kind: input, shape index: {}]
  %s3 = inlined_call_operand.vmem [shape: f32[128,64], index: 3, kind: input, shape index: {}]
  %s4 = inlined_call_operand.vmem [shape: f32[1,64], index: 4, kind: input, shape index: {}]
  %s5 = inlined_call_operand.vmem [shape: f32[64,5], index: 5, kind: input, shape index: {}]
  %s6 = inlined_call_operand.vmem [shape: f32[1,5], index: 6, kind: input, shape index: {}]
  %s7 = inlined_call_operand.hbm [shape: f32[2,5], index: 7, kind: output, shape index: {}]
  %s8 = sld [smem:[#allocation0]]
  $region42: #{tpu_custom_call.1} parent=0
    _
  %s10 = ssub.s32 1, %s8
  %s11 = scalar_select 0, %s10, %s8
  $region1: #{tpu_custom_call.1} parent=0
    #allocation2 [shape = 'u8[401408]{0}', space=vmem, size = 0x62000, scoped, tag = 'input window, operand 1, single buffered']
    #allocation3 [shape = 's32[1]{0}', space=sflag, size = 0x4, scoped, tag = 'scoped memory for tpu_custom_call.1']
    #allocation4 [shape = 's32[1]{0}', space=sflag, size = 0x4, scoped, tag = 'scoped memory for tpu_custom_call.1']
    #allocation5 [shape = 'u8[4096]{0}', space=vmem, size = 0x1000, scoped, tag = 'output window, operand 0, single buffered']
    %12 = vsyncpa [#allocation3], 0
    %13 = vsyncpa [#allocation4], 0
    // Predicated region
    $region2: #{tpu_custom_call.1} parent=1 // pred_check
      _
    $region3: #{tpu_custom_call.1} parent=1 // pred_check_branch
      %15 = sbr.rel (0) target = $region5
    $region4: #{tpu_custom_call.1} parent=1 // pred_region
      _
    $region5: #{tpu_custom_call.1} parent=1 // pred_fallthru
      _
    // Predicated region
    $region6: #{tpu_custom_call.1} parent=1 // pred_check
      _
    $region7: #{tpu_custom_call.1} parent=1 // pred_check_branch
      %17 = sbr.rel (0) target = $region9
    $region8: #{tpu_custom_call.1} parent=1 // pred_region
      %s19 = ssub.s32 12544, 12544
      %20 = vsyncadd [#allocation3], %s19
      %s21 = sshll.u32 [#allocation2], 4
      %s22 = int_to_ptr.vmem [resolvable:$true] %s21
      %27 = dma.hbm_to_vmem [thread:$0]  %s1, 12544, %s22, [#allocation3], 128, 128, 8
    $region9: #{tpu_custom_call.1} parent=1 // pred_fallthru
      _
    // Predicated region
    $region10: #{tpu_custom_call.1} parent=1 // pred_check
      _
    $region11: #{tpu_custom_call.1} parent=1 // pred_check_branch
      %29 = sbr.rel (0) target = $region13
    $region12: #{tpu_custom_call.1} parent=1 // pred_region
      _
    $region13: #{tpu_custom_call.1} parent=1 // pred_fallthru
      _
    // Predicated region
    $region14: #{tpu_custom_call.1} parent=1 // pred_check
      _
    $region15: #{tpu_custom_call.1} parent=1 // pred_check_branch
      %31 = sbr.rel (0) target = $region17
    $region16: #{tpu_custom_call.1} parent=1 // pred_region
      _
    $region17: #{tpu_custom_call.1} parent=1 // pred_fallthru
      _
    // Predicated region
    $region18: #{tpu_custom_call.1} parent=1 // pred_check
      _
    $region19: #{tpu_custom_call.1} parent=1 // pred_check_branch
      %33 = sbr.rel (0) target = $region21
    $region20: #{tpu_custom_call.1} parent=1 // pred_region
      _
    $region21: #{tpu_custom_call.1} parent=1 // pred_fallthru
      _
    // Predicated region
    $region22: #{tpu_custom_call.1} parent=1 // pred_check
      _
    $region23: #{tpu_custom_call.1} parent=1 // pred_check_branch
      %35 = sbr.rel (0) target = $region25
    $region24: #{tpu_custom_call.1} parent=1 // pred_region
      _
    $region25: #{tpu_custom_call.1} parent=1 // pred_fallthru
      _
    // Predicated region
    $region26: #{tpu_custom_call.1} parent=1 // pred_check
      _
    $region27: #{tpu_custom_call.1} parent=1 // pred_check_branch
      %37 = sbr.rel (0) target = $region29
    $region28: #{tpu_custom_call.1} parent=1 // pred_region
      _
    $region29: #{tpu_custom_call.1} parent=1 // pred_fallthru
      _
    // Predicated region
    $region30: #{tpu_custom_call.1} parent=1 // pred_check
      _
    $region31: #{tpu_custom_call.1} parent=1 // pred_check_branch
      %39 = sbr.rel (0) target = $region33
    $region32: #{tpu_custom_call.1} parent=1 // pred_region
      %40 = dma.done [#allocation3], 12544
    $region33: #{tpu_custom_call.1} parent=1 // pred_fallthru
      _
    %v42 = vld [vmem:[%s0] sm:$0xff]
    %v43 = vld [vmem:[%s0 + $0x8] sm:$0x3f]
    %v44 = vld [vmem:[%s0 + $0xe] sm:$0xff]
    %v45 = vld [vmem:[%s0 + $0x16] sm:$0x3f]
    %v46 = vld [vmem:[%s0 + $0x1c] sm:$0xff]
    %v47 = vld [vmem:[%s0 + $0x24] sm:$0x3f]
    %v48 = vld [vmem:[%s0 + $0x2a] sm:$0xff]
    %v49 = vld [vmem:[%s0 + $0x32] sm:$0x3f]
    %v58 = vcombine.low %v42, %v44
    %v59 = vcombine.high %v42, %v44
    %v60 = vcombine.low %v46, %v48
    %v61 = vcombine.high %v46, %v48
    %v63 = vunpack.c.l.s4 1983009808
    %v64 = vunpack.c.0.s8 %v63
    %v65 = vlaneseq
    %v66 = vshrl.u32 %v65, 7
    %v67 = vsub.s32 %v64, %v66
    %v68 = vrot.slane %v58, %v67
    %v70 = vunpack.c.l.s4 1983009808
    %v71 = vunpack.c.0.s8 %v70
    %v72 = vlaneseq
    %v73 = vshrl.u32 %v72, 7
    %v74 = vsub.s32 %v71, %v73
    %v75 = vrot.slane %v59, %v74
    %v77 = vunpack.c.l.s4 1983009808
    %v78 = vunpack.c.0.s8 %v77
    %v79 = vlaneseq
    %v80 = vshrl.u32 %v79, 7
    %v81 = vsub.s32 %v78, %v80
    %v82 = vrot.slane %v60, %v81
    %v84 = vunpack.c.l.s4 1983009808
    %v85 = vunpack.c.0.s8 %v84
    %v86 = vlaneseq
    %v87 = vshrl.u32 %v86, 7
    %v88 = vsub.s32 %v85, %v87
    %v89 = vrot.slane %v61, %v88
    %v90 = vcombine.low %v68, %v82
    %v91 = vcombine.high %v68, %v82
    %v92 = vcombine.low %v75, %v89
    %v93 = vcombine.high %v75, %v89
    %v94 = vcombine.low %v43, %v45
    %v95 = vcombine.high %v43, %v45
    %v96 = vcombine.low %v47, %v49
    %v97 = vcombine.high %v47, %v49
    %v99 = vunpack.c.l.s4 1983009808
    %v100 = vunpack.c.0.s8 %v99
    %v101 = vlaneseq
    %v102 = vshrl.u32 %v101, 7
    %v103 = vsub.s32 %v100, %v102
    %v104 = vrot.slane %v94, %v103
    %v106 = vunpack.c.l.s4 1983009808
    %v107 = vunpack.c.0.s8 %v106
    %v108 = vlaneseq
    %v109 = vshrl.u32 %v108, 7
    %v110 = vsub.s32 %v107, %v109
    %v111 = vrot.slane %v95, %v110
    %v113 = vunpack.c.l.s4 1983009808
    %v114 = vunpack.c.0.s8 %v113
    %v115 = vlaneseq
    %v116 = vshrl.u32 %v115, 7
    %v117 = vsub.s32 %v114, %v116
    %v118 = vrot.slane %v96, %v117
    %v120 = vunpack.c.l.s4 1983009808
    %v121 = vunpack.c.0.s8 %v120
    %v122 = vlaneseq
    %v123 = vshrl.u32 %v122, 7
    %v124 = vsub.s32 %v121, %v123
    %v125 = vrot.slane %v97, %v124
    %v126 = vcombine.low %v104, %v118
    %v127 = vcombine.high %v104, %v118
    %v128 = vcombine.low %v111, %v125
    %v136 = vpack.c.bf16 %v90, %v90
    %v137 = vpack.c.bf16 %v91, %v91
    %v138 = vpack.c.bf16 %v92, %v92
    %v139 = vpack.c.bf16 %v93, %v93
    %v140 = vpack.c.bf16 %v126, %v126
    %v141 = vpack.c.bf16 %v127, %v127
    %v142 = vpack.c.bf16 %v128, %v128
    %v143 = vld [vmem:[#allocation2] sm:$0xff]
    %v144 = vld [vmem:[#allocation2 + $0x8] sm:$0xff]
    %v145 = vld [vmem:[#allocation2 + $0x10] sm:$0xff]
    %v146 = vld [vmem:[#allocation2 + $0x18] sm:$0xff]
    %v147 = vld [vmem:[#allocation2 + $0x20] sm:$0xff]
    %v148 = vld [vmem:[#allocation2 + $0x28] sm:$0xff]
    %v149 = vld [vmem:[#allocation2 + $0x30] sm:$0xff]
    %v150 = vld [vmem:[#allocation2 + $0x38] sm:$0xff]
    %v151 = vld [vmem:[#allocation2 + $0x40] sm:$0xff]
    %v152 = vld [vmem:[#allocation2 + $0x48] sm:$0xff]
    %v153 = vld [vmem:[#allocation2 + $0x50] sm:$0xff]
    %v154 = vld [vmem:[#allocation2 + $0x58] sm:$0xff]
    %v155 = vld [vmem:[#allocation2 + $0x60] sm:$0xff]
    %v156 = vld [vmem:[#allocation2 + $0x68] sm:$0xff]
    %v157 = vld [vmem:[#allocation2 + $0x70] sm:$0xff]
    %v158 = vld [vmem:[#allocation2 + $0x78] sm:$0xff]
    %v159 = vld [vmem:[#allocation2 + $0x80] sm:$0xff]
    %v160 = vld [vmem:[#allocation2 + $0x88] sm:$0xff]
    %v161 = vld [vmem:[#allocation2 + $0x90] sm:$0xff]
    %v162 = vld [vmem:[#allocation2 + $0x98] sm:$0xff]
    %v163 = vld [vmem:[#allocation2 + $0xa0] sm:$0xff]
    %v164 = vld [vmem:[#allocation2 + $0xa8] sm:$0xff]
    %v165 = vld [vmem:[#allocation2 + $0xb0] sm:$0xff]
    %v166 = vld [vmem:[#allocation2 + $0xb8] sm:$0xff]
    %v167 = vld [vmem:[#allocation2 + $0xc0] sm:$0xff]
    %v168 = vld [vmem:[#allocation2 + $0xc8] sm:$0xff]
    %v169 = vld [vmem:[#allocation2 + $0xd0] sm:$0xff]
    %v170 = vld [vmem:[#allocation2 + $0xd8] sm:$0xff]
    %v171 = vld [vmem:[#allocation2 + $0xe0] sm:$0xff]
    %v172 = vld [vmem:[#allocation2 + $0xe8] sm:$0xff]
    %v173 = vld [vmem:[#allocation2 + $0xf0] sm:$0xff]
    %v174 = vld [vmem:[#allocation2 + $0xf8] sm:$0xff]
    %v175 = vld [vmem:[#allocation2 + $0x100] sm:$0xff]
    %v176 = vld [vmem:[#allocation2 + $0x108] sm:$0xff]
    %v177 = vld [vmem:[#allocation2 + $0x110] sm:$0xff]
    %v178 = vld [vmem:[#allocation2 + $0x118] sm:$0xff]
    %v179 = vld [vmem:[#allocation2 + $0x120] sm:$0xff]
    %v180 = vld [vmem:[#allocation2 + $0x128] sm:$0xff]
    %v181 = vld [vmem:[#allocation2 + $0x130] sm:$0xff]
    %v182 = vld [vmem:[#allocation2 + $0x138] sm:$0xff]
    %v183 = vld [vmem:[#allocation2 + $0x140] sm:$0xff]
    %v184 = vld [vmem:[#allocation2 + $0x148] sm:$0xff]
    %v185 = vld [vmem:[#allocation2 + $0x150] sm:$0xff]
    %v186 = vld [vmem:[#allocation2 + $0x158] sm:$0xff]
    %v187 = vld [vmem:[#allocation2 + $0x160] sm:$0xff]
    %v188 = vld [vmem:[#allocation2 + $0x168] sm:$0xff]
    %v189 = vld [vmem:[#allocation2 + $0x170] sm:$0xff]
    %v190 = vld [vmem:[#allocation2 + $0x178] sm:$0xff]
    %v191 = vld [vmem:[#allocation2 + $0x180] sm:$0xff]
    %v192 = vld [vmem:[#allocation2 + $0x188] sm:$0xff]
    %v193 = vld [vmem:[#allocation2 + $0x190] sm:$0xff]
    %v194 = vld [vmem:[#allocation2 + $0x198] sm:$0xff]
    %v195 = vld [vmem:[#allocation2 + $0x1a0] sm:$0xff]
    %v196 = vld [vmem:[#allocation2 + $0x1a8] sm:$0xff]
    %v197 = vld [vmem:[#allocation2 + $0x1b0] sm:$0xff]
    %v198 = vld [vmem:[#allocation2 + $0x1b8] sm:$0xff]
    %v199 = vld [vmem:[#allocation2 + $0x1c0] sm:$0xff]
    %v200 = vld [vmem:[#allocation2 + $0x1c8] sm:$0xff]
    %v201 = vld [vmem:[#allocation2 + $0x1d0] sm:$0xff]
    %v202 = vld [vmem:[#allocation2 + $0x1d8] sm:$0xff]
    %v203 = vld [vmem:[#allocation2 + $0x1e0] sm:$0xff]
    %v204 = vld [vmem:[#allocation2 + $0x1e8] sm:$0xff]
    %v205 = vld [vmem:[#allocation2 + $0x1f0] sm:$0xff]
    %v206 = vld [vmem:[#allocation2 + $0x1f8] sm:$0xff]
    %v207 = vld [vmem:[#allocation2 + $0x200] sm:$0xff]
    %v208 = vld [vmem:[#allocation2 + $0x208] sm:$0xff]
    %v209 = vld [vmem:[#allocation2 + $0x210] sm:$0xff]
    %v210 = vld [vmem:[#allocation2 + $0x218] sm:$0xff]
    %v211 = vld [vmem:[#allocation2 + $0x220] sm:$0xff]
    %v212 = vld [vmem:[#allocation2 + $0x228] sm:$0xff]
    %v213 = vld [vmem:[#allocation2 + $0x230] sm:$0xff]
    %v214 = vld [vmem:[#allocation2 + $0x238] sm:$0xff]
    %v215 = vld [vmem:[#allocation2 + $0x240] sm:$0xff]
    %v216 = vld [vmem:[#allocation2 + $0x248] sm:$0xff]
    %v217 = vld [vmem:[#allocation2 + $0x250] sm:$0xff]
    %v218 = vld [vmem:[#allocation2 + $0x258] sm:$0xff]
    %v219 = vld [vmem:[#allocation2 + $0x260] sm:$0xff]
    %v220 = vld [vmem:[#allocation2 + $0x268] sm:$0xff]
    %v221 = vld [vmem:[#allocation2 + $0x270] sm:$0xff]
    %v222 = vld [vmem:[#allocation2 + $0x278] sm:$0xff]
    %v223 = vld [vmem:[#allocation2 + $0x280] sm:$0xff]
    %v224 = vld [vmem:[#allocation2 + $0x288] sm:$0xff]
    %v225 = vld [vmem:[#allocation2 + $0x290] sm:$0xff]
    %v226 = vld [vmem:[#allocation2 + $0x298] sm:$0xff]
    %v227 = vld [vmem:[#allocation2 + $0x2a0] sm:$0xff]
    %v228 = vld [vmem:[#allocation2 + $0x2a8] sm:$0xff]
    %v229 = vld [vmem:[#allocation2 + $0x2b0] sm:$0xff]
    %v230 = vld [vmem:[#allocation2 + $0x2b8] sm:$0xff]
    %v231 = vld [vmem:[#allocation2 + $0x2c0] sm:$0xff]
    %v232 = vld [vmem:[#allocation2 + $0x2c8] sm:$0xff]
    %v233 = vld [vmem:[#allocation2 + $0x2d0] sm:$0xff]
    %v234 = vld [vmem:[#allocation2 + $0x2d8] sm:$0xff]
    %v235 = vld [vmem:[#allocation2 + $0x2e0] sm:$0xff]
    %v236 = vld [vmem:[#allocation2 + $0x2e8] sm:$0xff]
    %v237 = vld [vmem:[#allocation2 + $0x2f0] sm:$0xff]
    %v238 = vld [vmem:[#allocation2 + $0x2f8] sm:$0xff]
    %v239 = vld [vmem:[#allocation2 + $0x300] sm:$0xff]
    %v240 = vld [vmem:[#allocation2 + $0x308] sm:$0xff]
    %v241 = vpack.c.bf16 %v144, %v143
    %v242 = vpack.c.bf16 %v146, %v145
    %v243 = vpack.c.bf16 %v148, %v147
    %v244 = vpack.c.bf16 %v150, %v149
    %v245 = vpack.c.bf16 %v152, %v151
    %v246 = vpack.c.bf16 %v154, %v153
    %v247 = vpack.c.bf16 %v156, %v155
    %v248 = vpack.c.bf16 %v158, %v157
    %v249 = vpack.c.bf16 %v160, %v159
    %v250 = vpack.c.bf16 %v162, %v161
    %v251 = vpack.c.bf16 %v164, %v163
    %v252 = vpack.c.bf16 %v166, %v165
    %v253 = vpack.c.bf16 %v168, %v167
    %v254 = vpack.c.bf16 %v170, %v169
    %v255 = vpack.c.bf16 %v172, %v171
    %v256 = vpack.c.bf16 %v174, %v173
    %v257 = vpack.c.bf16 %v176, %v175
    %v258 = vpack.c.bf16 %v178, %v177
    %v259 = vpack.c.bf16 %v180, %v179
    %v260 = vpack.c.bf16 %v182, %v181
    %v261 = vpack.c.bf16 %v184, %v183
    %v262 = vpack.c.bf16 %v186, %v185
    %v263 = vpack.c.bf16 %v188, %v187
    %v264 = vpack.c.bf16 %v190, %v189
    %v265 = vpack.c.bf16 %v192, %v191
    %v266 = vpack.c.bf16 %v194, %v193
    %v267 = vpack.c.bf16 %v196, %v195
    %v268 = vpack.c.bf16 %v198, %v197
    %v269 = vpack.c.bf16 %v200, %v199
    %v270 = vpack.c.bf16 %v202, %v201
    %v271 = vpack.c.bf16 %v204, %v203
    %v272 = vpack.c.bf16 %v206, %v205
    %v273 = vpack.c.bf16 %v208, %v207
    %v274 = vpack.c.bf16 %v210, %v209
    %v275 = vpack.c.bf16 %v212, %v211
    %v276 = vpack.c.bf16 %v214, %v213
    %v277 = vpack.c.bf16 %v216, %v215
    %v278 = vpack.c.bf16 %v218, %v217
    %v279 = vpack.c.bf16 %v220, %v219
    %v280 = vpack.c.bf16 %v222, %v221
    %v281 = vpack.c.bf16 %v224, %v223
    %v282 = vpack.c.bf16 %v226, %v225
    %v283 = vpack.c.bf16 %v228, %v227
    %v284 = vpack.c.bf16 %v230, %v229
    %v285 = vpack.c.bf16 %v232, %v231
    %v286 = vpack.c.bf16 %v234, %v233
    %v287 = vpack.c.bf16 %v236, %v235
    %v288 = vpack.c.bf16 %v238, %v237
    %v289 = vpack.c.bf16 %v240, %v239
    %v290 = vld [vmem:[%s2] sm:$0x1]
    %v292 = vlaneseq
    %v293 = vshrl.u32 %v292, 7
    %v294 = vsub.s32 0, %v293
    %v295 = vrot.slane %v290, %v294
    %vm297 = vcmask 130048
    %v299 = vsel %vm297, %v142, 0
    %301 = vmatprep.subr.bf16.mxu0 0
    %302 = vmatpush1.bf16.msra.mxu0 %v241
    %303 = vmatprep.subr.bf16.mxu0 0
    %304 = vmatpush1.bf16.msra.mxu0 %v242
    %305 = vmatprep.subr.bf16.mxu0 0
    %306 = vmatpush1.bf16.msra.mxu0 %v243
    %307 = vmatprep.subr.bf16.mxu0 0
    %308 = vmatpush1.bf16.msra.mxu0 %v244
    %309 = vmatprep.subr.bf16.mxu0 0
    %310 = vmatpush1.bf16.msra.mxu0 %v245
    %311 = vmatprep.subr.bf16.mxu0 0
    %312 = vmatpush1.bf16.msra.mxu0 %v246
    %313 = vmatprep.subr.bf16.mxu0 0
    %314 = vmatpush1.bf16.msra.mxu0 %v247
    %315 = vmatprep.subr.bf16.mxu0 0
    %316 = vmatpush1.bf16.msra.mxu0 %v248
    %317 = vmatprep.subr.bf16.mxu0 0
    %318 = vmatpush1.bf16.msra.mxu0 %v249
    %319 = vmatprep.subr.bf16.mxu0 0
    %320 = vmatpush1.bf16.msra.mxu0 %v250
    %321 = vmatprep.subr.bf16.mxu0 0
    %322 = vmatpush1.bf16.msra.mxu0 %v251
    %323 = vmatprep.subr.bf16.mxu0 0
    %324 = vmatpush1.bf16.msra.mxu0 %v252
    %325 = vmatprep.subr.bf16.mxu0 0
    %326 = vmatpush1.bf16.msra.mxu0 %v253
    %327 = vmatprep.subr.bf16.mxu0 0
    %328 = vmatpush1.bf16.msra.mxu0 %v254
    %329 = vmatprep.subr.bf16.mxu0 0
    %330 = vmatpush1.bf16.msra.mxu0 %v255
    %331 = vmatprep.subr.bf16.mxu0 0
    %332 = vmatpush1.bf16.msra.mxu0 %v256
    %333 = vmatprep.mubr.bf16.mxu0 %v137
    %334 = vmatmul.mubr.bf16.gmra.mrb[0].mxu0 %v136
    %v335 = vpop.f32.mrb[0].mxu0
    %v336 = vadd.f32 %v295, %v335
    %v337 = vpop.f32.mrb[0].mxu0
    %v338 = vpop.f32.mrb[0].mxu0
    %v339 = vpop.f32.mrb[0].mxu0
    %340 = vdwg.mxu0
    %341 = vmatprep.subr.bf16.mxu0 0
    %342 = vmatpush1.bf16.msra.mxu0 %v257
    %343 = vmatprep.subr.bf16.mxu0 0
    %344 = vmatpush1.bf16.msra.mxu0 %v258
    %345 = vmatprep.subr.bf16.mxu0 0
    %346 = vmatpush1.bf16.msra.mxu0 %v259
    %347 = vmatprep.subr.bf16.mxu0 0
    %348 = vmatpush1.bf16.msra.mxu0 %v260
    %349 = vmatprep.subr.bf16.mxu0 0
    %350 = vmatpush1.bf16.msra.mxu0 %v261
    %351 = vmatprep.subr.bf16.mxu0 0
    %352 = vmatpush1.bf16.msra.mxu0 %v262
    %353 = vmatprep.subr.bf16.mxu0 0
    %354 = vmatpush1.bf16.msra.mxu0 %v263
    %355 = vmatprep.subr.bf16.mxu0 0
    %356 = vmatpush1.bf16.msra.mxu0 %v264
    %357 = vmatprep.subr.bf16.mxu0 0
    %358 = vmatpush1.bf16.msra.mxu0 %v265
    %359 = vmatprep.subr.bf16.mxu0 0
    %360 = vmatpush1.bf16.msra.mxu0 %v266
    %361 = vmatprep.subr.bf16.mxu0 0
    %362 = vmatpush1.bf16.msra.mxu0 %v267
    %363 = vmatprep.subr.bf16.mxu0 0
    %364 = vmatpush1.bf16.msra.mxu0 %v268
    %365 = vmatprep.subr.bf16.mxu0 0
    %366 = vmatpush1.bf16.msra.mxu0 %v269
    %367 = vmatprep.subr.bf16.mxu0 0
    %368 = vmatpush1.bf16.msra.mxu0 %v270
    %369 = vmatprep.subr.bf16.mxu0 0
    %370 = vmatpush1.bf16.msra.mxu0 %v271
    %371 = vmatprep.subr.bf16.mxu0 0
    %372 = vmatpush1.bf16.msra.mxu0 %v272
    %373 = vmatprep.mubr.bf16.mxu0 %v139
    %374 = vmatmul.mubr.bf16.gmra.mrb[0].mxu0 %v138
    %v375 = vpop.f32.mrb[0].mxu0
    %v376 = vadd.f32 %v336, %v375
    %v377 = vpop.f32.mrb[0].mxu0
    %v378 = vpop.f32.mrb[0].mxu0
    %v379 = vpop.f32.mrb[0].mxu0
    %380 = vdwg.mxu0
    %381 = vmatprep.subr.bf16.mxu0 0
    %382 = vmatpush1.bf16.msra.mxu0 %v273
    %383 = vmatprep.subr.bf16.mxu0 0
    %384 = vmatpush1.bf16.msra.mxu0 %v274
    %385 = vmatprep.subr.bf16.mxu0 0
    %386 = vmatpush1.bf16.msra.mxu0 %v275
    %387 = vmatprep.subr.bf16.mxu0 0
    %388 = vmatpush1.bf16.msra.mxu0 %v276
    %389 = vmatprep.subr.bf16.mxu0 0
    %390 = vmatpush1.bf16.msra.mxu0 %v277
    %391 = vmatprep.subr.bf16.mxu0 0
    %392 = vmatpush1.bf16.msra.mxu0 %v278
    %393 = vmatprep.subr.bf16.mxu0 0
    %394 = vmatpush1.bf16.msra.mxu0 %v279
    %395 = vmatprep.subr.bf16.mxu0 0
    %396 = vmatpush1.bf16.msra.mxu0 %v280
    %397 = vmatprep.subr.bf16.mxu0 0
    %398 = vmatpush1.bf16.msra.mxu0 %v281
    %399 = vmatprep.subr.bf16.mxu0 0
    %400 = vmatpush1.bf16.msra.mxu0 %v282
    %401 = vmatprep.subr.bf16.mxu0 0
    %402 = vmatpush1.bf16.msra.mxu0 %v283
    %403 = vmatprep.subr.bf16.mxu0 0
    %404 = vmatpush1.bf16.msra.mxu0 %v284
    %405 = vmatprep.subr.bf16.mxu0 0
    %406 = vmatpush1.bf16.msra.mxu0 %v285
    %407 = vmatprep.subr.bf16.mxu0 0
    %408 = vmatpush1.bf16.msra.mxu0 %v286
    %409 = vmatprep.subr.bf16.mxu0 0
    %410 = vmatpush1.bf16.msra.mxu0 %v287
    %411 = vmatprep.subr.bf16.mxu0 0
    %412 = vmatpush1.bf16.msra.mxu0 %v288
    %413 = vmatprep.mubr.bf16.mxu0 %v141
    %414 = vmatmul.mubr.bf16.gmra.mrb[0].mxu0 %v140
    %v415 = vpop.f32.mrb[0].mxu0
    %v416 = vadd.f32 %v376, %v415
    %v417 = vpop.f32.mrb[0].mxu0
    %v418 = vpop.f32.mrb[0].mxu0
    %v419 = vpop.f32.mrb[0].mxu0
    %420 = vdwg.mxu0
    %421 = vmatprep.subr.bf16.mxu0 0
    %422 = vmatpush1.bf16.msra.mxu0 %v289
    %423 = vmatprep.subr.bf16.mxu0 0
    %424 = vmatpush1.bf16.msra.mxu0 0
    %425 = vmatprep.subr.bf16.mxu0 0
    %426 = vmatpush1.bf16.msra.mxu0 0
    %427 = vmatprep.subr.bf16.mxu0 0
    %428 = vmatpush1.bf16.msra.mxu0 0
    %429 = vmatprep.subr.bf16.mxu0 0
    %430 = vmatpush1.bf16.msra.mxu0 0
    %431 = vmatprep.subr.bf16.mxu0 0
    %432 = vmatpush1.bf16.msra.mxu0 0
    %433 = vmatprep.subr.bf16.mxu0 0
    %434 = vmatpush1.bf16.msra.mxu0 0
    %435 = vmatprep.subr.bf16.mxu0 0
    %436 = vmatpush1.bf16.msra.mxu0 0
    %437 = vmatprep.subr.bf16.mxu0 0
    %438 = vmatpush1.bf16.msra.mxu0 0
    %439 = vmatprep.subr.bf16.mxu0 0
    %440 = vmatpush1.bf16.msra.mxu0 0
    %441 = vmatprep.subr.bf16.mxu0 0
    %442 = vmatpush1.bf16.msra.mxu0 0
    %443 = vmatprep.subr.bf16.mxu0 0
    %444 = vmatpush1.bf16.msra.mxu0 0
    %445 = vmatprep.subr.bf16.mxu0 0
    %446 = vmatpush1.bf16.msra.mxu0 0
    %447 = vmatprep.subr.bf16.mxu0 0
    %448 = vmatpush1.bf16.msra.mxu0 0
    %449 = vmatprep.subr.bf16.mxu0 0
    %450 = vmatpush1.bf16.msra.mxu0 0
    %451 = vmatprep.subr.bf16.mxu0 0
    %452 = vmatpush1.bf16.msra.mxu0 0
    %453 = vmatprep.mubr.bf16.mxu0 0
    %454 = vmatmul.mubr.bf16.gmra.mrb[0].mxu0 %v299
    %v455 = vpop.f32.mrb[0].mxu0
    %v456 = vadd.f32 %v416, %v455
    %v457 = vpop.f32.mrb[0].mxu0
    %v458 = vpop.f32.mrb[0].mxu0
    %v459 = vpop.f32.mrb[0].mxu0
    %460 = vdwg.mxu0
    %v461 = vmax.f32 %v456, 0.0
    %v462 = vpack.c.bf16 %v461, %v461
    %v463 = vld [vmem:[%s3] sm:$0xff]
    %v464 = vld [vmem:[%s3 + $0x8] sm:$0xff]
    %v465 = vld [vmem:[%s3 + $0x10] sm:$0xff]
    %v466 = vld [vmem:[%s3 + $0x18] sm:$0xff]
    %v467 = vld [vmem:[%s3 + $0x20] sm:$0xff]
    %v468 = vld [vmem:[%s3 + $0x28] sm:$0xff]
    %v469 = vld [vmem:[%s3 + $0x30] sm:$0xff]
    %v470 = vld [vmem:[%s3 + $0x38] sm:$0xff]
    %v471 = vld [vmem:[%s3 + $0x40] sm:$0xff]
    %v472 = vld [vmem:[%s3 + $0x48] sm:$0xff]
    %v473 = vld [vmem:[%s3 + $0x50] sm:$0xff]
    %v474 = vld [vmem:[%s3 + $0x58] sm:$0xff]
    %v475 = vld [vmem:[%s3 + $0x60] sm:$0xff]
    %v476 = vld [vmem:[%s3 + $0x68] sm:$0xff]
    %v477 = vld [vmem:[%s3 + $0x70] sm:$0xff]
    %v478 = vld [vmem:[%s3 + $0x78] sm:$0xff]
    %v479 = vpack.c.bf16 %v464, %v463
    %v480 = vpack.c.bf16 %v466, %v465
    %v481 = vpack.c.bf16 %v468, %v467
    %v482 = vpack.c.bf16 %v470, %v469
    %v483 = vpack.c.bf16 %v472, %v471
    %v484 = vpack.c.bf16 %v474, %v473
    %v485 = vpack.c.bf16 %v476, %v475
    %v486 = vpack.c.bf16 %v478, %v477
    %v487 = vld [vmem:[%s4] sm:$0x1]
    %v489 = vlaneseq
    %v490 = vshrl.u32 %v489, 7
    %v491 = vsub.s32 0, %v490
    %v492 = vrot.slane %v487, %v491
    %494 = vmatprep.subr.bf16.mxu0 0
    %495 = vmatpush1.bf16.msra.mxu0 %v479
    %496 = vmatprep.subr.bf16.mxu0 0
    %497 = vmatpush1.bf16.msra.mxu0 %v480
    %498 = vmatprep.subr.bf16.mxu0 0
    %499 = vmatpush1.bf16.msra.mxu0 %v481
    %500 = vmatprep.subr.bf16.mxu0 0
    %501 = vmatpush1.bf16.msra.mxu0 %v482
    %502 = vmatprep.subr.bf16.mxu0 0
    %503 = vmatpush1.bf16.msra.mxu0 %v483
    %504 = vmatprep.subr.bf16.mxu0 0
    %505 = vmatpush1.bf16.msra.mxu0 %v484
    %506 = vmatprep.subr.bf16.mxu0 0
    %507 = vmatpush1.bf16.msra.mxu0 %v485
    %508 = vmatprep.subr.bf16.mxu0 0
    %509 = vmatpush1.bf16.msra.mxu0 %v486
    %510 = vmatprep.subr.bf16.mxu0 0
    %511 = vmatpush1.bf16.msra.mxu0 0
    %512 = vmatprep.subr.bf16.mxu0 0
    %513 = vmatpush1.bf16.msra.mxu0 0
    %514 = vmatprep.subr.bf16.mxu0 0
    %515 = vmatpush1.bf16.msra.mxu0 0
    %516 = vmatprep.subr.bf16.mxu0 0
    %517 = vmatpush1.bf16.msra.mxu0 0
    %518 = vmatprep.subr.bf16.mxu0 0
    %519 = vmatpush1.bf16.msra.mxu0 0
    %520 = vmatprep.subr.bf16.mxu0 0
    %521 = vmatpush1.bf16.msra.mxu0 0
    %522 = vmatprep.subr.bf16.mxu0 0
    %523 = vmatpush1.bf16.msra.mxu0 0
    %524 = vmatprep.subr.bf16.mxu0 0
    %525 = vmatpush1.bf16.msra.mxu0 0
    %526 = vmatprep.mubr.bf16.mxu0 0
    %527 = vmatmul.mubr.bf16.gmra.mrb[0].mxu0 %v462
    %v528 = vpop.f32.mrb[0].mxu0
    %v529 = vadd.f32 %v492, %v528
    %v530 = vpop.f32.mrb[0].mxu0
    %v531 = vpop.f32.mrb[0].mxu0
    %v532 = vpop.f32.mrb[0].mxu0
    %533 = vdwg.mxu0
    %v534 = vmax.f32 %v529, 0.0
    %v535 = vpack.c.bf16 %v534, %v534
    %v536 = vld [vmem:[%s5] sm:$0xff]
    %v537 = vld [vmem:[%s5 + $0x8] sm:$0xff]
    %v538 = vld [vmem:[%s5 + $0x10] sm:$0xff]
    %v539 = vld [vmem:[%s5 + $0x18] sm:$0xff]
    %v540 = vld [vmem:[%s5 + $0x20] sm:$0xff]
    %v541 = vld [vmem:[%s5 + $0x28] sm:$0xff]
    %v542 = vld [vmem:[%s5 + $0x30] sm:$0xff]
    %v543 = vld [vmem:[%s5 + $0x38] sm:$0xff]
    %v544 = vpack.c.bf16 %v537, %v536
    %v545 = vpack.c.bf16 %v539, %v538
    %v546 = vpack.c.bf16 %v541, %v540
    %v547 = vpack.c.bf16 %v543, %v542
    %v548 = vld [vmem:[%s6] sm:$0x1]
    %v550 = vlaneseq
    %v551 = vshrl.u32 %v550, 7
    %v552 = vsub.s32 0, %v551
    %v553 = vrot.slane %v548, %v552
    %vm555 = vcmask 523264
    %v557 = vsel %vm555, %v535, 0
    %559 = vmatprep.subr.bf16.mxu0 0
    %560 = vmatpush1.bf16.msra.mxu0 %v544
    %561 = vmatprep.subr.bf16.mxu0 0
    %562 = vmatpush1.bf16.msra.mxu0 %v545
    %563 = vmatprep.subr.bf16.mxu0 0
    %564 = vmatpush1.bf16.msra.mxu0 %v546
    %565 = vmatprep.subr.bf16.mxu0 0
    %566 = vmatpush1.bf16.msra.mxu0 %v547
    %567 = vmatprep.subr.bf16.mxu0 0
    %568 = vmatpush1.bf16.msra.mxu0 0
    %569 = vmatprep.subr.bf16.mxu0 0
    %570 = vmatpush1.bf16.msra.mxu0 0
    %571 = vmatprep.subr.bf16.mxu0 0
    %572 = vmatpush1.bf16.msra.mxu0 0
    %573 = vmatprep.subr.bf16.mxu0 0
    %574 = vmatpush1.bf16.msra.mxu0 0
    %575 = vmatprep.subr.bf16.mxu0 0
    %576 = vmatpush1.bf16.msra.mxu0 0
    %577 = vmatprep.subr.bf16.mxu0 0
    %578 = vmatpush1.bf16.msra.mxu0 0
    %579 = vmatprep.subr.bf16.mxu0 0
    %580 = vmatpush1.bf16.msra.mxu0 0
    %581 = vmatprep.subr.bf16.mxu0 0
    %582 = vmatpush1.bf16.msra.mxu0 0
    %583 = vmatprep.subr.bf16.mxu0 0
    %584 = vmatpush1.bf16.msra.mxu0 0
    %585 = vmatprep.subr.bf16.mxu0 0
    %586 = vmatpush1.bf16.msra.mxu0 0
    %587 = vmatprep.subr.bf16.mxu0 0
    %588 = vmatpush1.bf16.msra.mxu0 0
    %589 = vmatprep.subr.bf16.mxu0 0
    %590 = vmatpush1.bf16.msra.mxu0 0
    %591 = vmatprep.mubr.bf16.mxu0 0
    %592 = vmatmul.mubr.bf16.gmra.mrb[0].mxu0 %v557
    %v593 = vpop.f32.mrb[0].mxu0
    %v594 = vadd.f32 %v553, %v593
    %v595 = vpop.f32.mrb[0].mxu0
    %v596 = vpop.f32.mrb[0].mxu0
    %v597 = vpop.f32.mrb[0].mxu0
    %598 = vdwg.mxu0
    %vm599 = vcmask 39936
    %600 = vst.msk [vmem:[#allocation5] sm:$0xff] %vm599, %v594
    // Predicated region
    $region34: #{tpu_custom_call.1} parent=1 // pred_check
      _
    $region35: #{tpu_custom_call.1} parent=1 // pred_check_branch
      %602 = sbr.rel (0) target = $region37
    $region36: #{tpu_custom_call.1} parent=1 // pred_region
      %s604 = ssub.s32 128, 32
      %605 = vsyncadd [#allocation4], %s604
      %s606 = sshll.u32 [#allocation5], 4
      %s607 = int_to_ptr.vmem [resolvable:$true] %s606
      %612 = dma.vmem_to_hbm [thread:$0]  %s607, 32, %s7, [#allocation4], 32, 32, 2
    $region37: #{tpu_custom_call.1} parent=1 // pred_fallthru
      _
    // Predicated region
    $region38: #{tpu_custom_call.1} parent=1 // pred_check
      _
    $region39: #{tpu_custom_call.1} parent=1 // pred_check_branch
      %614 = sbr.rel (0) target = $region41
    $region40: #{tpu_custom_call.1} parent=1 // pred_region
      %615 = dma.done [#allocation4], 128
    $region41: #{tpu_custom_call.1} parent=1 // pred_fallthru
      _
    %616 = vsyncpa [#allocation3], 1
    %617 = vsyncpa [#allocation4], 1

</llo_original>
